<compile_context>
chip_gen: v7x
topology: tpu7x:2x2x1
jax: 0.10.0
libtpu: 0.0.40
codegen_flags: <defaults>
</compile_context>

<pallas_src>
import jax
import jax.numpy as jnp
from jax import lax
from jax.experimental import pallas as pl
from jax.experimental.pallas import tpu as pltpu


def _round_up(x, m):
    return (x + m - 1) // m * m


def _maddpg_critic_kernel(x_ref, w1_ref, b12_ref, w2_ref, w3_ref, b3_ref, q_ref):
    """One batch tile: x (TB, K) -> q^T (1, TB)."""
    x = x_ref[...]                                            # (TB, K), compute dtype

    # fc1 + ReLU (concat already done in the wrapper -> single MXU stream)
    h1 = jnp.dot(x, w1_ref[...], preferred_element_type=jnp.float32)
    h1 = jnp.maximum(h1 + b12_ref[0:1, :], 0.0)               # (TB, H) f32 epilogue

    # fc2 + ReLU
    h2 = jnp.dot(h1.astype(x.dtype), w2_ref[...],
                 preferred_element_type=jnp.float32)
    h2 = jnp.maximum(h2 + b12_ref[1:2, :], 0.0)               # (TB, H) f32

    # fc3 computed transposed: (1, H) . (TB, H)^T -> (1, TB)  (lane-dense output)
    qt = lax.dot_general(
        w3_ref[...], h2.astype(x.dtype),
        dimension_numbers=(((1,), (1,)), ((), ())),
        preferred_element_type=jnp.float32)                   # (1, TB)
    q_ref[...] = (qt + b3_ref[0, 0]).astype(q_ref.dtype)


def maddpg_critic_forward(inputs, actions, params, *,
                          compute_dtype=jnp.bfloat16, block_rows=1024):
    """inputs: (..., feat_in), actions: (..., act_feat). Returns q: (..., 1)."""
    lead = inputs.shape[:-1]
    feat_in = inputs.shape[-1]
    act_feat = actions.shape[-1]

    w1, b1, w2, b2, w3, b3 = params
    hidden = w1.shape[0]
    K = feat_in + act_feat
    assert w1.shape == (hidden, K)

    # torch.cat((inputs, actions), dim=-1), done once in the wrapper.
    x2d = jnp.concatenate(
        [inputs.reshape(-1, feat_in), actions.reshape(-1, act_feat)],
        axis=-1).astype(compute_dtype)                        # (B, K)
    B = x2d.shape[0]

    # Batch tile: large (amortise ~0.35us/step overhead), multiple of 128 so the
    # (1, TB) output block is lane-dense; capped for small problems.
    TB = min(_round_up(block_rows, 128), _round_up(B, 128))
    B_pad = _round_up(B, TB)
    if B_pad != B:
        x2d = jnp.pad(x2d, ((0, B_pad - B), (0, 0)))
    grid = (B_pad // TB,)

    # PyTorch nn.Linear stores W as (out, in) and computes x @ W.T + b:
    # pre-transpose once so the kernel does x @ W.
    w1_t = w1.T.astype(compute_dtype)                         # (K, H)
    w2_t = w2.T.astype(compute_dtype)                         # (H, H)
    w3_row = w3.reshape(1, hidden).astype(compute_dtype)      # (1, H)
    b12 = jnp.stack([b1, b2]).astype(jnp.float32)             # (2, H), f32 epilogue
    b3_s = b3.reshape(1, 1).astype(jnp.float32)               # scalar -> SMEM

    itemsize = jnp.dtype(compute_dtype).itemsize
    cost = pl.CostEstimate(
        flops=2 * B_pad * (K * hidden + hidden * hidden + hidden),
        transcendentals=0,
        bytes_accessed=(B_pad * K * itemsize                       # activations in
                        + (K * hidden + hidden * hidden + hidden) * itemsize  # weights
                        + (2 * hidden + 1) * 4                     # biases
                        + B_pad * 4))                              # q out (f32)

    qt = pl.pallas_call(
        _maddpg_critic_kernel,
        out_shape=jax.ShapeDtypeStruct((1, B_pad), jnp.float32),
        grid_spec=pltpu.PrefetchScalarGridSpec(
            num_scalar_prefetch=0,
            grid=grid,
            in_specs=[
                # activations: tiled over batch -> double-buffered pipeline
                pl.BlockSpec((TB, K), lambda i: (i, 0)),
                # weights/biases: constant index_map -> DMA'd once, VMEM-resident
                pl.BlockSpec((K, hidden), lambda i: (0, 0)),
                pl.BlockSpec((2, hidden), lambda i: (0, 0)),
                pl.BlockSpec((hidden, hidden), lambda i: (0, 0)),
                pl.BlockSpec((1, hidden), lambda i: (0, 0)),
                # final bias: single scalar in SMEM
                pl.BlockSpec(memory_space=pltpu.MemorySpace.SMEM),
            ],
            out_specs=pl.BlockSpec((1, TB), lambda i: (0, i)),
        ),
        compiler_params=pltpu.CompilerParams(
            dimension_semantics=("parallel",),       # both TCs on v7x split the batch
            vmem_limit_bytes=32 * 1024 * 1024),
        cost_estimate=cost,
    )(x2d, w1_t, b12, w2_t, w3_row, b3_s)

    q = qt[0, :B].astype(jnp.float32)
    return q.reshape(*lead, 1)


def init_params(key, input_shape, hidden_dim):
    """Deterministic init mimicking PyTorch nn.Linear default (uniform +/- 1/sqrt(fan_in))."""
    def linear(key, fan_in, fan_out):
        kw, kb = jax.random.split(key)
        bound = 1.0 / jnp.sqrt(fan_in)
        w = jax.random.uniform(kw, (fan_out, fan_in), jnp.float32, -bound, bound)
        b = jax.random.uniform(kb, (fan_out,), jnp.float32, -bound, bound)
        return w, b

    k1, k2, k3 = jax.random.split(key, 3)
    w1, b1 = linear(k1, input_shape, hidden_dim)
    w2, b2 = linear(k2, hidden_dim, hidden_dim)
    w3, b3 = linear(k3, hidden_dim, 1)
    return (w1, b1, w2, b2, w3, b3)


if __name__ == "__main__":
    # Module hyperparameters (small, consistent with MADDPGCritic.__init__)
    n_agents = 3
    state_shape = 48
    obs_shape = 16
    hidden_dim = 32
    n_actions = 5
    obs_agent_id = True
    obs_last_action = True
    obs_individual_obs = True

    # input_shape as computed by the module
    input_shape = state_shape
    if obs_individual_obs:
        input_shape += obs_shape
    if obs_agent_id:
        input_shape += n_agents
    input_shape += n_actions * n_agents
    if obs_last_action:
        input_shape += n_actions
    # = 48 + 16 + 3 + 15 + 5 = 87

    batch = 4
    # "inputs" carries everything except the joint actions (concatenated in forward)
    feat_in = state_shape + obs_shape + n_agents + n_actions          # 72
    act_feat = n_actions * n_agents                                   # 15
    assert feat_in + act_feat == input_shape

    key = jax.random.PRNGKey(0)
    k_in, k_act, k_par = jax.random.split(key, 3)
    inputs = jax.random.normal(k_in, (batch, n_agents, feat_in), jnp.float32)
    actions = jax.random.normal(k_act, (batch, n_agents, act_feat), jnp.float32)
    params = init_params(k_par, input_shape, hidden_dim)

    # Pure-JAX reference (f32) of the same forward pass.
    w1, b1, w2, b2, w3, b3 = params
    cat = jnp.concatenate([inputs, actions], axis=-1)
    h = jax.nn.relu(cat @ w1.T + b1)
    h = jax.nn.relu(h @ w2.T + b2)
    q_ref = h @ w3.T + b3

    # f32 compute path (tighter check).
    q_f32 = maddpg_critic_forward(inputs, actions, params,
                                  compute_dtype=jnp.float32)
    q_f32 = jax.block_until_ready(q_f32)
    assert q_f32.shape == (batch, n_agents, 1)
    assert jnp.allclose(q_f32, q_ref, atol=1e-2, rtol=1e-2)

    # bf16 compute path (halves HBM traffic on v6e/v7x; f32 accumulation).
    q_bf16 = maddpg_critic_forward(inputs, actions, params,
                                   compute_dtype=jnp.bfloat16)
    q_bf16 = jax.block_until_ready(q_bf16)
    assert q_bf16.shape == (batch, n_agents, 1)
    assert jnp.allclose(q_bf16, q_ref, atol=5e-2, rtol=5e-2)

    print("KERNEL_OK")
</pallas_src>

<mosaic_0001>
module attributes {stable_mosaic.version = 11 : i64} {
  func.func @_maddpg_critic_kernel(%arg0: i32, %arg1: memref<128x87xf32, #tpu.memory_space<vmem>>, %arg2: memref<87x32xf32, #tpu.memory_space<vmem>>, %arg3: memref<2x32xf32, #tpu.memory_space<vmem>>, %arg4: memref<32x32xf32, #tpu.memory_space<vmem>>, %arg5: memref<1x32xf32, #tpu.memory_space<vmem>>, %arg6: memref<1x1xf32, #tpu.memory_space<smem>>, %arg7: memref<1x128xf32, #tpu.memory_space<vmem>>) attributes {dimension_semantics = [#tpu.dimension_semantics<parallel>], iteration_bounds = array<i64: 1>, scalar_prefetch = 0 : i64, scratch_operands = 0 : i64, tpu.core_type = #tpu.core_type<tc>, window_params = [{transform_indices = @transform_0, window_bounds = array<i64: 128, 87>}, {pipeline_mode = #tpu.pipeline_mode<synchronous>, transform_indices = @transform_1, window_bounds = array<i64: 87, 32>}, {pipeline_mode = #tpu.pipeline_mode<synchronous>, transform_indices = @transform_2, window_bounds = array<i64: 2, 32>}, {pipeline_mode = #tpu.pipeline_mode<synchronous>, transform_indices = @transform_3, window_bounds = array<i64: 32, 32>}, {pipeline_mode = #tpu.pipeline_mode<synchronous>, transform_indices = @transform_4, window_bounds = array<i64: 1, 32>}, {transform_indices = @transform_5, window_bounds = array<i64: 1, 1>}, {transform_indices = @transform_6, window_bounds = array<i64: 1, 128>}]} {
    %c0 = arith.constant 0 : index
    %c0_0 = arith.constant 0 : index
    %0 = vector.load %arg1[%c0, %c0_0] : memref<128x87xf32, #tpu.memory_space<vmem>>, vector<128x87xf32>
    %c0_1 = arith.constant 0 : index
    %c0_2 = arith.constant 0 : index
    %1 = vector.load %arg2[%c0_1, %c0_2] : memref<87x32xf32, #tpu.memory_space<vmem>>, vector<87x32xf32>
    %cst = arith.constant dense<0.000000e+00> : vector<128x32xf32>
    %2 = tpu.matmul %0, %1, %cst {dimension_numbers = #tpu.dot_dimension_numbers<[1], [0], [0], [1], [0, 0, 1, 1], [], []>} : vector<128x87xf32>, vector<87x32xf32>, vector<128x32xf32> -> vector<128x32xf32>
    %c0_3 = arith.constant 0 : index
    %c0_4 = arith.constant 0 : index
    %3 = vector.load %arg3[%c0_3, %c0_4] : memref<2x32xf32, #tpu.memory_space<vmem>>, vector<1x32xf32>
    %4 = vector.broadcast %3 : vector<1x32xf32> to vector<128x32xf32>
    %5 = arith.addf %2, %4 : vector<128x32xf32>
    %cst_5 = arith.constant 0.000000e+00 : f32
    %6 = vector.broadcast %cst_5 : f32 to vector<128x32xf32>
    %7 = arith.maximumf %5, %6 : vector<128x32xf32>
    %c0_6 = arith.constant 0 : index
    %c0_7 = arith.constant 0 : index
    %8 = vector.load %arg4[%c0_6, %c0_7] : memref<32x32xf32, #tpu.memory_space<vmem>>, vector<32x32xf32>
    %cst_8 = arith.constant dense<0.000000e+00> : vector<128x32xf32>
    %9 = tpu.matmul %7, %8, %cst_8 {dimension_numbers = #tpu.dot_dimension_numbers<[1], [0], [0], [1], [0, 0, 1, 1], [], []>} : vector<128x32xf32>, vector<32x32xf32>, vector<128x32xf32> -> vector<128x32xf32>
    %c1 = arith.constant 1 : index
    %c0_9 = arith.constant 0 : index
    %10 = vector.load %arg3[%c1, %c0_9] : memref<2x32xf32, #tpu.memory_space<vmem>>, vector<1x32xf32>
    %11 = vector.broadcast %10 : vector<1x32xf32> to vector<128x32xf32>
    %12 = arith.addf %9, %11 : vector<128x32xf32>
    %cst_10 = arith.constant 0.000000e+00 : f32
    %13 = vector.broadcast %cst_10 : f32 to vector<128x32xf32>
    %14 = arith.maximumf %12, %13 : vector<128x32xf32>
    %c0_11 = arith.constant 0 : index
    %c0_12 = arith.constant 0 : index
    %15 = vector.load %arg5[%c0_11, %c0_12] : memref<1x32xf32, #tpu.memory_space<vmem>>, vector<1x32xf32>
    %cst_13 = arith.constant dense<0.000000e+00> : vector<1x128xf32>
    %16 = tpu.matmul %15, %14, %cst_13 {dimension_numbers = #tpu.dot_dimension_numbers<[1], [1], [0], [0], [0, 0, 1, 0], [], []>} : vector<1x32xf32>, vector<128x32xf32>, vector<1x128xf32> -> vector<1x128xf32>
    %c0_14 = arith.constant 0 : index
    %c0_15 = arith.constant 0 : index
    %17 = memref.load %arg6[%c0_14, %c0_15] : memref<1x1xf32, #tpu.memory_space<smem>>
    %18 = vector.broadcast %17 : f32 to vector<1x128xf32>
    %19 = arith.addf %16, %18 : vector<1x128xf32>
    %c0_16 = arith.constant 0 : index
    %c0_17 = arith.constant 0 : index
    %20 = vector.load %arg7[%c0_16, %c0_17] : memref<1x128xf32, #tpu.memory_space<vmem>>, vector<1x128xf32>
    tpu.vector_store %arg7[%c0_16, %c0_17], %19 {strides = array<i32>} : memref<1x128xf32, #tpu.memory_space<vmem>>, vector<1x128xf32>,
    return
  }
  func.func @transform_0(%arg0: i32) -> (i32, i32) {
    %c0_i32 = arith.constant 0 : i32
    %c0_i32_0 = arith.constant 0 : i32
    return %arg0, %c0_i32 : i32, i32
  }
  func.func @transform_1(%arg0: i32) -> (i32, i32) {
    %c0_i32 = arith.constant 0 : i32
    %c0_i32_0 = arith.constant 0 : i32
    %c0_i32_1 = arith.constant 0 : i32
    return %c0_i32, %c0_i32_0 : i32, i32
  }
  func.func @transform_2(%arg0: i32) -> (i32, i32) {
    %c0_i32 = arith.constant 0 : i32
    %c0_i32_0 = arith.constant 0 : i32
    %c0_i32_1 = arith.constant 0 : i32
    return %c0_i32, %c0_i32_0 : i32, i32
  }
  func.func @transform_3(%arg0: i32) -> (i32, i32) {
    %c0_i32 = arith.constant 0 : i32
    %c0_i32_0 = arith.constant 0 : i32
    %c0_i32_1 = arith.constant 0 : i32
    return %c0_i32, %c0_i32_0 : i32, i32
  }
  func.func @transform_4(%arg0: i32) -> (i32, i32) {
    %c0_i32 = arith.constant 0 : i32
    %c0_i32_0 = arith.constant 0 : i32
    %c0_i32_1 = arith.constant 0 : i32
    return %c0_i32, %c0_i32_0 : i32, i32
  }
  func.func @transform_5(%arg0: i32) -> (i32, i32) {
    %c0_i32 = arith.constant 0 : i32
    %c0_i32_0 = arith.constant 0 : i32
    %c0_i32_1 = arith.constant 0 : i32
    return %c0_i32, %c0_i32_0 : i32, i32
  }
  func.func @transform_6(%arg0: i32) -> (i32, i32) {
    %c0_i32 = arith.constant 0 : i32
    %c0_i32_0 = arith.constant 0 : i32
    return %c0_i32, %arg0 : i32, i32
  }
}

</mosaic_0001>

<llo_original>
// kernel: tpu_custom_call.1
$region0: #{tpu_custom_call.1}
  #allocation0 [shape = 'u32[]', space=smem, size = 0x4, offset = 0x4, fixed_abs, tag = 'smem constant byte address 0x4 - core index']
  #allocation1 [shape = 'u32[144,128]{1,0:T(1,128)}', space=vmem, size = 0x12000, scoped, tag = 'internal scratch']
  #allocation2 [shape = 'f32[1,1]{1,0:T(1,128)S(6)}', space=smem, size = 0x200, scoped, tag = 'scoped memory for tpu_custom_call.1']
  %s0 = inlined_call_operand.vmem [shape: f32[128,87], index: 0, kind: input, shape index: {}]
  %s1 = inlined_call_operand.vmem [shape: f32[87,32], index: 1, kind: input, shape index: {}]
  %s2 = inlined_call_operand.vmem [shape: f32[2,32], index: 2, kind: input, shape index: {}]
  %s3 = inlined_call_operand.vmem [shape: f32[32,32], index: 3, kind: input, shape index: {}]
  %s4 = inlined_call_operand.vmem [shape: f32[1,32], index: 4, kind: input, shape index: {}]
  %s5 = inlined_call_operand.<no memory space> [shape: f32[1,1], index: 5, kind: input, shape index: {}]
  %s6 = inlined_call_operand.hbm [shape: f32[1,128], index: 6, kind: output, shape index: {}]
  %s7 = sld [smem:[#allocation0]]
  $region34: #{tpu_custom_call.1} parent=0
    _
  %s9 = ssub.s32 1, %s7
  %s10 = scalar_select 0, %s9, %s7
  %11 = sst [smem:[#allocation2]] %s5
  $region1: #{tpu_custom_call.1} parent=0
    #allocation3 [shape = 'u8[512]{0}', space=vmem, size = 0x400, scoped, tag = 'output window, operand 0, single buffered']
    #allocation4 [shape = 's32[1]{0}', space=sflag, size = 0x4, scoped, tag = 'scoped memory for tpu_custom_call.1']
    %12 = vsyncpa [#allocation4], 0
    // Predicated region
    $region2: #{tpu_custom_call.1} parent=1 // pred_check
      _
    $region3: #{tpu_custom_call.1} parent=1 // pred_check_branch
      %14 = sbr.rel (0) target = $region5
    $region4: #{tpu_custom_call.1} parent=1 // pred_region
      _
    $region5: #{tpu_custom_call.1} parent=1 // pred_fallthru
      _
    // Predicated region
    $region6: #{tpu_custom_call.1} parent=1 // pred_check
      _
    $region7: #{tpu_custom_call.1} parent=1 // pred_check_branch
      %16 = sbr.rel (0) target = $region9
    $region8: #{tpu_custom_call.1} parent=1 // pred_region
      _
    $region9: #{tpu_custom_call.1} parent=1 // pred_fallthru
      _
    // Predicated region
    $region10: #{tpu_custom_call.1} parent=1 // pred_check
      _
    $region11: #{tpu_custom_call.1} parent=1 // pred_check_branch
      %18 = sbr.rel (0) target = $region13
    $region12: #{tpu_custom_call.1} parent=1 // pred_region
      _
    $region13: #{tpu_custom_call.1} parent=1 // pred_fallthru
      _
    // Predicated region
    $region14: #{tpu_custom_call.1} parent=1 // pred_check
      _
    $region15: #{tpu_custom_call.1} parent=1 // pred_check_branch
      %20 = sbr.rel (0) target = $region17
    $region16: #{tpu_custom_call.1} parent=1 // pred_region
      _
    $region17: #{tpu_custom_call.1} parent=1 // pred_fallthru
      _
    // Predicated region
    $region18: #{tpu_custom_call.1} parent=1 // pred_check
      _
    $region19: #{tpu_custom_call.1} parent=1 // pred_check_branch
      %22 = sbr.rel (0) target = $region21
    $region20: #{tpu_custom_call.1} parent=1 // pred_region
      _
    $region21: #{tpu_custom_call.1} parent=1 // pred_fallthru
      _
    // Predicated region
    $region22: #{tpu_custom_call.1} parent=1 // pred_check
      _
    $region23: #{tpu_custom_call.1} parent=1 // pred_check_branch
      %24 = sbr.rel (0) target = $region25
    $region24: #{tpu_custom_call.1} parent=1 // pred_region
      _
    $region25: #{tpu_custom_call.1} parent=1 // pred_fallthru
      _
    %v25 = vld [vmem:[%s0] sm:$0xff]
    %v26 = vld [vmem:[%s0 + $0x8] sm:$0xff]
    %v27 = vld [vmem:[%s0 + $0x10] sm:$0xff]
    %v28 = vld [vmem:[%s0 + $0x18] sm:$0xff]
    %v29 = vld [vmem:[%s0 + $0x20] sm:$0xff]
    %v30 = vld [vmem:[%s0 + $0x28] sm:$0xff]
    %v31 = vld [vmem:[%s0 + $0x30] sm:$0xff]
    %v32 = vld [vmem:[%s0 + $0x38] sm:$0xff]
    %v33 = vld [vmem:[%s0 + $0x40] sm:$0xff]
    %v34 = vld [vmem:[%s0 + $0x48] sm:$0xff]
    %v35 = vld [vmem:[%s0 + $0x50] sm:$0xff]
    %v36 = vld [vmem:[%s0 + $0x58] sm:$0xff]
    %v37 = vld [vmem:[%s0 + $0x60] sm:$0xff]
    %v38 = vld [vmem:[%s0 + $0x68] sm:$0xff]
    %v39 = vld [vmem:[%s0 + $0x70] sm:$0xff]
    %v40 = vld [vmem:[%s0 + $0x78] sm:$0xff]
    %v41 = vld [vmem:[%s1] sm:$0xff]
    %v42 = vld [vmem:[%s1 + $0x8] sm:$0xff]
    %v43 = vld [vmem:[%s1 + $0x10] sm:$0xff]
    %v44 = vld [vmem:[%s1 + $0x18] sm:$0xff]
    %v45 = vld [vmem:[%s1 + $0x20] sm:$0xff]
    %v46 = vld [vmem:[%s1 + $0x28] sm:$0xff]
    %v47 = vld [vmem:[%s1 + $0x30] sm:$0xff]
    %v48 = vld [vmem:[%s1 + $0x38] sm:$0xff]
    %v49 = vld [vmem:[%s1 + $0x40] sm:$0xff]
    %v50 = vld [vmem:[%s1 + $0x48] sm:$0xff]
    %v51 = vld [vmem:[%s1 + $0x50] sm:$0x7f]
    %v52 = vld [vmem:[%s2] sm:$0x1]
    %v53 = vlaneseq
    %v54 = vshrl.u32 %v53, 7
    %v55 = vsub.s32 0, %v54
    %v56 = vrot.slane %v52, %v55
    %vm57 = vcmask 711680
    %v59 = vsel %vm57, %v25, 0
    %v62 = vsel %vm57, %v26, 0
    %v65 = vsel %vm57, %v27, 0
    %v68 = vsel %vm57, %v28, 0
    %v71 = vsel %vm57, %v29, 0
    %v74 = vsel %vm57, %v30, 0
    %v77 = vsel %vm57, %v31, 0
    %v80 = vsel %vm57, %v32, 0
    %v83 = vsel %vm57, %v33, 0
    %v86 = vsel %vm57, %v34, 0
    %v89 = vsel %vm57, %v35, 0
    %v92 = vsel %vm57, %v36, 0
    %v95 = vsel %vm57, %v37, 0
    %v98 = vsel %vm57, %v38, 0
    %v101 = vsel %vm57, %v39, 0
    %v104 = vsel %vm57, %v40, 0
    %vm106 = vcmask 1046528
    %v108 = vsel %vm106, %v51, 0
    %110 = vmatprep.subr.mxu0 0.0
    %111 = vmatpush1.msra.mxu0 %v41
    %112 = vmatprep.subr.mxu0 0.0
    %113 = vmatpush1.msra.mxu0 %v42
    %114 = vmatprep.subr.mxu0 0.0
    %115 = vmatpush1.msra.mxu0 %v43
    %116 = vmatprep.subr.mxu0 0.0
    %117 = vmatpush1.msra.mxu0 %v44
    %118 = vmatprep.subr.mxu0 0.0
    %119 = vmatpush1.msra.mxu0 %v45
    %120 = vmatprep.subr.mxu0 0.0
    %121 = vmatpush1.msra.mxu0 %v46
    %122 = vmatprep.subr.mxu0 0.0
    %123 = vmatpush1.msra.mxu0 %v47
    %124 = vmatprep.subr.mxu0 0.0
    %125 = vmatpush1.msra.mxu0 %v48
    %126 = vmatprep.subr.mxu0 0.0
    %127 = vmatpush1.msra.mxu0 %v49
    %128 = vmatprep.subr.mxu0 0.0
    %129 = vmatpush1.msra.mxu0 %v50
    %130 = vmatprep.subr.mxu0 0.0
    %131 = vmatpush1.msra.mxu0 %v108
    %132 = vmatprep.subr.mxu0 0.0
    %133 = vmatpush1.msra.mxu0 0.0
    %134 = vmatprep.subr.mxu0 0.0
    %135 = vmatpush1.msra.mxu0 0.0
    %136 = vmatprep.subr.mxu0 0.0
    %137 = vmatpush1.msra.mxu0 0.0
    %138 = vmatprep.subr.mxu0 0.0
    %139 = vmatpush1.msra.mxu0 0.0
    %140 = vmatprep.subr.mxu0 0.0
    %141 = vmatpush1.msra.mxu0 0.0
    %142 = vmatprep.subr.mxu0 0.0
    %143 = vmatpush1.msra.mxu0 0.0
    %144 = vmatprep.subr.mxu0 0.0
    %145 = vmatpush1.msra.mxu0 0.0
    %146 = vmatprep.subr.mxu0 0.0
    %147 = vmatpush1.msra.mxu0 0.0
    %148 = vmatprep.subr.mxu0 0.0
    %149 = vmatpush1.msra.mxu0 0.0
    %150 = vmatprep.subr.mxu0 0.0
    %151 = vmatpush1.msra.mxu0 0.0
    %152 = vmatprep.subr.mxu0 0.0
    %153 = vmatpush1.msra.mxu0 0.0
    %154 = vmatprep.subr.mxu0 0.0
    %155 = vmatpush1.msra.mxu0 0.0
    %156 = vmatprep.subr.mxu0 0.0
    %157 = vmatpush1.msra.mxu0 0.0
    %158 = vmatprep.subr.mxu0 0.0
    %159 = vmatpush1.msra.mxu0 0.0
    %160 = vmatprep.subr.mxu0 0.0
    %161 = vmatpush1.msra.mxu0 0.0
    %162 = vmatprep.subr.mxu0 0.0
    %163 = vmatpush1.msra.mxu0 0.0
    %164 = vmatprep.subr.mxu0 0.0
    %165 = vmatpush1.msra.mxu0 0.0
    %166 = vmatprep.subr.mxu0 0.0
    %167 = vmatpush1.msra.mxu0 0.0
    %168 = vmatprep.subr.mxu0 0.0
    %169 = vmatpush1.msra.mxu0 0.0
    %170 = vmatprep.subr.mxu0 0.0
    %171 = vmatpush1.msra.mxu0 0.0
    %172 = vmatprep.subr.mxu0 0.0
    %173 = vmatpush1.msra.mxu0 0.0
    %174 = vmatprep.mubr.f32.mxu0 0.0
    %175 = vmatmul.mubr.f32.gmra.mrb[0].mxu0 %v59
    %v176 = vpop.f32.mrb[0].mxu0
    %v177 = vadd.f32 %v56, %v176
    %v178 = vpop.f32.mrb[0].mxu0
    %179 = vmatprep.mubr.f32.mxu0 0.0
    %180 = vmatmul.mubr.f32.gmra.mrb[0].mxu0 %v62
    %v181 = vpop.f32.mrb[0].mxu0
    %v182 = vadd.f32 %v56, %v181
    %v183 = vpop.f32.mrb[0].mxu0
    %184 = vmatprep.mubr.f32.mxu0 0.0
    %185 = vmatmul.mubr.f32.gmra.mrb[0].mxu0 %v65
    %v186 = vpop.f32.mrb[0].mxu0
    %v187 = vadd.f32 %v56, %v186
    %v188 = vpop.f32.mrb[0].mxu0
    %189 = vmatprep.mubr.f32.mxu0 0.0
    %190 = vmatmul.mubr.f32.gmra.mrb[0].mxu0 %v68
    %v191 = vpop.f32.mrb[0].mxu0
    %v192 = vadd.f32 %v56, %v191
    %v193 = vpop.f32.mrb[0].mxu0
    %194 = vmatprep.mubr.f32.mxu0 0.0
    %195 = vmatmul.mubr.f32.gmra.mrb[0].mxu0 %v71
    %v196 = vpop.f32.mrb[0].mxu0
    %v197 = vadd.f32 %v56, %v196
    %v198 = vpop.f32.mrb[0].mxu0
    %199 = vmatprep.mubr.f32.mxu0 0.0
    %200 = vmatmul.mubr.f32.gmra.mrb[0].mxu0 %v74
    %v201 = vpop.f32.mrb[0].mxu0
    %v202 = vadd.f32 %v56, %v201
    %v203 = vpop.f32.mrb[0].mxu0
    %204 = vmatprep.mubr.f32.mxu0 0.0
    %205 = vmatmul.mubr.f32.gmra.mrb[0].mxu0 %v77
    %v206 = vpop.f32.mrb[0].mxu0
    %v207 = vadd.f32 %v56, %v206
    %v208 = vpop.f32.mrb[0].mxu0
    %209 = vmatprep.mubr.f32.mxu0 0.0
    %210 = vmatmul.mubr.f32.gmra.mrb[0].mxu0 %v80
    %v211 = vpop.f32.mrb[0].mxu0
    %v212 = vadd.f32 %v56, %v211
    %v213 = vpop.f32.mrb[0].mxu0
    %214 = vmatprep.mubr.f32.mxu0 0.0
    %215 = vmatmul.mubr.f32.gmra.mrb[0].mxu0 %v83
    %v216 = vpop.f32.mrb[0].mxu0
    %v217 = vadd.f32 %v56, %v216
    %v218 = vpop.f32.mrb[0].mxu0
    %219 = vmatprep.mubr.f32.mxu0 0.0
    %220 = vmatmul.mubr.f32.gmra.mrb[0].mxu0 %v86
    %v221 = vpop.f32.mrb[0].mxu0
    %v222 = vadd.f32 %v56, %v221
    %v223 = vpop.f32.mrb[0].mxu0
    %224 = vmatprep.mubr.f32.mxu0 0.0
    %225 = vmatmul.mubr.f32.gmra.mrb[0].mxu0 %v89
    %v226 = vpop.f32.mrb[0].mxu0
    %v227 = vadd.f32 %v56, %v226
    %v228 = vpop.f32.mrb[0].mxu0
    %229 = vmatprep.mubr.f32.mxu0 0.0
    %230 = vmatmul.mubr.f32.gmra.mrb[0].mxu0 %v92
    %v231 = vpop.f32.mrb[0].mxu0
    %v232 = vadd.f32 %v56, %v231
    %v233 = vpop.f32.mrb[0].mxu0
    %234 = vmatprep.mubr.f32.mxu0 0.0
    %235 = vmatmul.mubr.f32.gmra.mrb[0].mxu0 %v95
    %v236 = vpop.f32.mrb[0].mxu0
    %v237 = vadd.f32 %v56, %v236
    %v238 = vpop.f32.mrb[0].mxu0
    %239 = vmatprep.mubr.f32.mxu0 0.0
    %240 = vmatmul.mubr.f32.gmra.mrb[0].mxu0 %v98
    %v241 = vpop.f32.mrb[0].mxu0
    %v242 = vadd.f32 %v56, %v241
    %v243 = vpop.f32.mrb[0].mxu0
    %244 = vmatprep.mubr.f32.mxu0 0.0
    %245 = vmatmul.mubr.f32.gmra.mrb[0].mxu0 %v101
    %v246 = vpop.f32.mrb[0].mxu0
    %v247 = vadd.f32 %v56, %v246
    %v248 = vpop.f32.mrb[0].mxu0
    %249 = vmatprep.mubr.f32.mxu0 0.0
    %250 = vmatmul.mubr.f32.gmra.mrb[0].mxu0 %v104
    %v251 = vpop.f32.mrb[0].mxu0
    %v252 = vadd.f32 %v56, %v251
    %v253 = vpop.f32.mrb[0].mxu0
    %254 = vdwg.mxu0
    %v255 = vmax.f32 %v177, 0.0
    %v256 = vmax.f32 %v182, 0.0
    %v257 = vmax.f32 %v187, 0.0
    %v258 = vmax.f32 %v192, 0.0
    %v259 = vmax.f32 %v197, 0.0
    %v260 = vmax.f32 %v202, 0.0
    %v261 = vmax.f32 %v207, 0.0
    %v262 = vmax.f32 %v212, 0.0
    %v263 = vmax.f32 %v217, 0.0
    %v264 = vmax.f32 %v222, 0.0
    %v265 = vmax.f32 %v227, 0.0
    %v266 = vmax.f32 %v232, 0.0
    %v267 = vmax.f32 %v237, 0.0
    %v268 = vmax.f32 %v242, 0.0
    %v269 = vmax.f32 %v247, 0.0
    %v270 = vmax.f32 %v252, 0.0
    %v271 = vld [vmem:[%s3] sm:$0xff]
    %v272 = vld [vmem:[%s3 + $0x8] sm:$0xff]
    %v273 = vld [vmem:[%s3 + $0x10] sm:$0xff]
    %v274 = vld [vmem:[%s3 + $0x18] sm:$0xff]
    %v275 = vld [vmem:[%s2 + $0x1] sm:$0x1]
    %v276 = vlaneseq
    %v277 = vshrl.u32 %v276, 7
    %v278 = vsub.s32 0, %v277
    %v279 = vrot.slane %v275, %v278
    %vm280 = vcmask 261120
    %v282 = vsel %vm280, %v255, 0
    %v285 = vsel %vm280, %v256, 0
    %v288 = vsel %vm280, %v257, 0
    %v291 = vsel %vm280, %v258, 0
    %v294 = vsel %vm280, %v259, 0
    %v297 = vsel %vm280, %v260, 0
    %v300 = vsel %vm280, %v261, 0
    %v303 = vsel %vm280, %v262, 0
    %v306 = vsel %vm280, %v263, 0
    %v309 = vsel %vm280, %v264, 0
    %v312 = vsel %vm280, %v265, 0
    %v315 = vsel %vm280, %v266, 0
    %v318 = vsel %vm280, %v267, 0
    %v321 = vsel %vm280, %v268, 0
    %v324 = vsel %vm280, %v269, 0
    %v327 = vsel %vm280, %v270, 0
    %329 = vmatprep.subr.mxu0 0.0
    %330 = vmatpush1.msra.mxu0 %v271
    %331 = vmatprep.subr.mxu0 0.0
    %332 = vmatpush1.msra.mxu0 %v272
    %333 = vmatprep.subr.mxu0 0.0
    %334 = vmatpush1.msra.mxu0 %v273
    %335 = vmatprep.subr.mxu0 0.0
    %336 = vmatpush1.msra.mxu0 %v274
    %337 = vmatprep.subr.mxu0 0.0
    %338 = vmatpush1.msra.mxu0 0.0
    %339 = vmatprep.subr.mxu0 0.0
    %340 = vmatpush1.msra.mxu0 0.0
    %341 = vmatprep.subr.mxu0 0.0
    %342 = vmatpush1.msra.mxu0 0.0
    %343 = vmatprep.subr.mxu0 0.0
    %344 = vmatpush1.msra.mxu0 0.0
    %345 = vmatprep.subr.mxu0 0.0
    %346 = vmatpush1.msra.mxu0 0.0
    %347 = vmatprep.subr.mxu0 0.0
    %348 = vmatpush1.msra.mxu0 0.0
    %349 = vmatprep.subr.mxu0 0.0
    %350 = vmatpush1.msra.mxu0 0.0
    %351 = vmatprep.subr.mxu0 0.0
    %352 = vmatpush1.msra.mxu0 0.0
    %353 = vmatprep.subr.mxu0 0.0
    %354 = vmatpush1.msra.mxu0 0.0
    %355 = vmatprep.subr.mxu0 0.0
    %356 = vmatpush1.msra.mxu0 0.0
    %357 = vmatprep.subr.mxu0 0.0
    %358 = vmatpush1.msra.mxu0 0.0
    %359 = vmatprep.subr.mxu0 0.0
    %360 = vmatpush1.msra.mxu0 0.0
    %361 = vmatprep.subr.mxu0 0.0
    %362 = vmatpush1.msra.mxu0 0.0
    %363 = vmatprep.subr.mxu0 0.0
    %364 = vmatpush1.msra.mxu0 0.0
    %365 = vmatprep.subr.mxu0 0.0
    %366 = vmatpush1.msra.mxu0 0.0
    %367 = vmatprep.subr.mxu0 0.0
    %368 = vmatpush1.msra.mxu0 0.0
    %369 = vmatprep.subr.mxu0 0.0
    %370 = vmatpush1.msra.mxu0 0.0
    %371 = vmatprep.subr.mxu0 0.0
    %372 = vmatpush1.msra.mxu0 0.0
    %373 = vmatprep.subr.mxu0 0.0
    %374 = vmatpush1.msra.mxu0 0.0
    %375 = vmatprep.subr.mxu0 0.0
    %376 = vmatpush1.msra.mxu0 0.0
    %377 = vmatprep.subr.mxu0 0.0
    %378 = vmatpush1.msra.mxu0 0.0
    %379 = vmatprep.subr.mxu0 0.0
    %380 = vmatpush1.msra.mxu0 0.0
    %381 = vmatprep.subr.mxu0 0.0
    %382 = vmatpush1.msra.mxu0 0.0
    %383 = vmatprep.subr.mxu0 0.0
    %384 = vmatpush1.msra.mxu0 0.0
    %385 = vmatprep.subr.mxu0 0.0
    %386 = vmatpush1.msra.mxu0 0.0
    %387 = vmatprep.subr.mxu0 0.0
    %388 = vmatpush1.msra.mxu0 0.0
    %389 = vmatprep.subr.mxu0 0.0
    %390 = vmatpush1.msra.mxu0 0.0
    %391 = vmatprep.subr.mxu0 0.0
    %392 = vmatpush1.msra.mxu0 0.0
    %393 = vmatprep.mubr.f32.mxu0 0.0
    %394 = vmatmul.mubr.f32.gmra.mrb[0].mxu0 %v282
    %v395 = vpop.f32.mrb[0].mxu0
    %v396 = vadd.f32 %v279, %v395
    %v397 = vpop.f32.mrb[0].mxu0
    %398 = vmatprep.mubr.f32.mxu0 0.0
    %399 = vmatmul.mubr.f32.gmra.mrb[0].mxu0 %v285
    %v400 = vpop.f32.mrb[0].mxu0
    %v401 = vadd.f32 %v279, %v400
    %v402 = vpop.f32.mrb[0].mxu0
    %403 = vmatprep.mubr.f32.mxu0 0.0
    %404 = vmatmul.mubr.f32.gmra.mrb[0].mxu0 %v288
    %v405 = vpop.f32.mrb[0].mxu0
    %v406 = vadd.f32 %v279, %v405
    %v407 = vpop.f32.mrb[0].mxu0
    %408 = vmatprep.mubr.f32.mxu0 0.0
    %409 = vmatmul.mubr.f32.gmra.mrb[0].mxu0 %v291
    %v410 = vpop.f32.mrb[0].mxu0
    %v411 = vadd.f32 %v279, %v410
    %v412 = vpop.f32.mrb[0].mxu0
    %413 = vmatprep.mubr.f32.mxu0 0.0
    %414 = vmatmul.mubr.f32.gmra.mrb[0].mxu0 %v294
    %v415 = vpop.f32.mrb[0].mxu0
    %v416 = vadd.f32 %v279, %v415
    %v417 = vpop.f32.mrb[0].mxu0
    %418 = vmatprep.mubr.f32.mxu0 0.0
    %419 = vmatmul.mubr.f32.gmra.mrb[0].mxu0 %v297
    %v420 = vpop.f32.mrb[0].mxu0
    %v421 = vadd.f32 %v279, %v420
    %v422 = vpop.f32.mrb[0].mxu0
    %423 = vmatprep.mubr.f32.mxu0 0.0
    %424 = vmatmul.mubr.f32.gmra.mrb[0].mxu0 %v300
    %v425 = vpop.f32.mrb[0].mxu0
    %v426 = vadd.f32 %v279, %v425
    %v427 = vpop.f32.mrb[0].mxu0
    %428 = vmatprep.mubr.f32.mxu0 0.0
    %429 = vmatmul.mubr.f32.gmra.mrb[0].mxu0 %v303
    %v430 = vpop.f32.mrb[0].mxu0
    %v431 = vadd.f32 %v279, %v430
    %v432 = vpop.f32.mrb[0].mxu0
    %433 = vmatprep.mubr.f32.mxu0 0.0
    %434 = vmatmul.mubr.f32.gmra.mrb[0].mxu0 %v306
    %v435 = vpop.f32.mrb[0].mxu0
    %v436 = vadd.f32 %v279, %v435
    %v437 = vpop.f32.mrb[0].mxu0
    %438 = vmatprep.mubr.f32.mxu0 0.0
    %439 = vmatmul.mubr.f32.gmra.mrb[0].mxu0 %v309
    %v440 = vpop.f32.mrb[0].mxu0
    %v441 = vadd.f32 %v279, %v440
    %v442 = vpop.f32.mrb[0].mxu0
    %443 = vmatprep.mubr.f32.mxu0 0.0
    %444 = vmatmul.mubr.f32.gmra.mrb[0].mxu0 %v312
    %v445 = vpop.f32.mrb[0].mxu0
    %v446 = vadd.f32 %v279, %v445
    %v447 = vpop.f32.mrb[0].mxu0
    %448 = vmatprep.mubr.f32.mxu0 0.0
    %449 = vmatmul.mubr.f32.gmra.mrb[0].mxu0 %v315
    %v450 = vpop.f32.mrb[0].mxu0
    %v451 = vadd.f32 %v279, %v450
    %v452 = vpop.f32.mrb[0].mxu0
    %453 = vmatprep.mubr.f32.mxu0 0.0
    %454 = vmatmul.mubr.f32.gmra.mrb[0].mxu0 %v318
    %v455 = vpop.f32.mrb[0].mxu0
    %v456 = vadd.f32 %v279, %v455
    %v457 = vpop.f32.mrb[0].mxu0
    %458 = vmatprep.mubr.f32.mxu0 0.0
    %459 = vmatmul.mubr.f32.gmra.mrb[0].mxu0 %v321
    %v460 = vpop.f32.mrb[0].mxu0
    %v461 = vadd.f32 %v279, %v460
    %v462 = vpop.f32.mrb[0].mxu0
    %463 = vmatprep.mubr.f32.mxu0 0.0
    %464 = vmatmul.mubr.f32.gmra.mrb[0].mxu0 %v324
    %v465 = vpop.f32.mrb[0].mxu0
    %v466 = vadd.f32 %v279, %v465
    %v467 = vpop.f32.mrb[0].mxu0
    %468 = vmatprep.mubr.f32.mxu0 0.0
    %469 = vmatmul.mubr.f32.gmra.mrb[0].mxu0 %v327
    %v470 = vpop.f32.mrb[0].mxu0
    %v471 = vadd.f32 %v279, %v470
    %v472 = vpop.f32.mrb[0].mxu0
    %473 = vdwg.mxu0
    %v474 = vmax.f32 %v396, 0.0
    %v475 = vmax.f32 %v401, 0.0
    %v476 = vmax.f32 %v406, 0.0
    %v477 = vmax.f32 %v411, 0.0
    %v478 = vmax.f32 %v416, 0.0
    %v479 = vmax.f32 %v421, 0.0
    %v480 = vmax.f32 %v426, 0.0
    %v481 = vmax.f32 %v431, 0.0
    %v482 = vmax.f32 %v436, 0.0
    %v483 = vmax.f32 %v441, 0.0
    %v484 = vmax.f32 %v446, 0.0
    %v485 = vmax.f32 %v451, 0.0
    %v486 = vmax.f32 %v456, 0.0
    %v487 = vmax.f32 %v461, 0.0
    %v488 = vmax.f32 %v466, 0.0
    %v489 = vmax.f32 %v471, 0.0
    %v490 = vld [vmem:[%s4] sm:$0x1]
    %s491 = sld [smem:[#allocation2]]
    %v492 = vstv %s491
    %v494 = vsel %vm280, %v490, 0
    %v497 = vsel %vm280, %v474, 0
    %v500 = vsel %vm280, %v475, 0
    %v503 = vsel %vm280, %v476, 0
    %v506 = vsel %vm280, %v477, 0
    %v509 = vsel %vm280, %v478, 0
    %v512 = vsel %vm280, %v479, 0
    %v515 = vsel %vm280, %v480, 0
    %v518 = vsel %vm280, %v481, 0
    %v521 = vsel %vm280, %v482, 0
    %v524 = vsel %vm280, %v483, 0
    %v527 = vsel %vm280, %v484, 0
    %v530 = vsel %vm280, %v485, 0
    %v533 = vsel %vm280, %v486, 0
    %v536 = vsel %vm280, %v487, 0
    %v539 = vsel %vm280, %v488, 0
    %v542 = vsel %vm280, %v489, 0
    %544 = vmatprep.subr.mxu0 0.0
    %545 = vmatpush1.xpose.msra.mxu0 %v497
    %546 = vmatprep.subr.mxu0 0.0
    %547 = vmatpush1.xpose.msra.mxu0 %v500
    %548 = vmatprep.subr.mxu0 0.0
    %549 = vmatpush1.xpose.msra.mxu0 %v503
    %550 = vmatprep.subr.mxu0 0.0
    %551 = vmatpush1.xpose.msra.mxu0 %v506
    %552 = vmatprep.subr.mxu0 0.0
    %553 = vmatpush1.xpose.msra.mxu0 %v509
    %554 = vmatprep.subr.mxu0 0.0
    %555 = vmatpush1.xpose.msra.mxu0 %v512
    %556 = vmatprep.subr.mxu0 0.0
    %557 = vmatpush1.xpose.msra.mxu0 %v515
    %558 = vmatprep.subr.mxu0 0.0
    %559 = vmatpush1.xpose.msra.mxu0 %v518
    %560 = vmatprep.subr.mxu0 0.0
    %561 = vmatpush1.xpose.msra.mxu0 %v521
    %562 = vmatprep.subr.mxu0 0.0
    %563 = vmatpush1.xpose.msra.mxu0 %v524
    %564 = vmatprep.subr.mxu0 0.0
    %565 = vmatpush1.xpose.msra.mxu0 %v527
    %566 = vmatprep.subr.mxu0 0.0
    %567 = vmatpush1.xpose.msra.mxu0 %v530
    %568 = vmatprep.subr.mxu0 0.0
    %569 = vmatpush1.xpose.msra.mxu0 %v533
    %570 = vmatprep.subr.mxu0 0.0
    %571 = vmatpush1.xpose.msra.mxu0 %v536
    %572 = vmatprep.subr.mxu0 0.0
    %573 = vmatpush1.xpose.msra.mxu0 %v539
    %574 = vmatprep.subr.mxu0 0.0
    %575 = vmatpush1.xpose.msra.mxu0 %v542
    %576 = vmatprep.subr.mxu0 0.0
    %577 = vmatpush1.xpose.msra.mxu0 0.0
    %578 = vmatprep.subr.mxu0 0.0
    %579 = vmatpush1.xpose.msra.mxu0 0.0
    %580 = vmatprep.subr.mxu0 0.0
    %581 = vmatpush1.xpose.msra.mxu0 0.0
    %582 = vmatprep.subr.mxu0 0.0
    %583 = vmatpush1.xpose.msra.mxu0 0.0
    %584 = vmatprep.subr.mxu0 0.0
    %585 = vmatpush1.xpose.msra.mxu0 0.0
    %586 = vmatprep.subr.mxu0 0.0
    %587 = vmatpush1.xpose.msra.mxu0 0.0
    %588 = vmatprep.subr.mxu0 0.0
    %589 = vmatpush1.xpose.msra.mxu0 0.0
    %590 = vmatprep.subr.mxu0 0.0
    %591 = vmatpush1.xpose.msra.mxu0 0.0
    %592 = vmatprep.subr.mxu0 0.0
    %593 = vmatpush1.xpose.msra.mxu0 0.0
    %594 = vmatprep.subr.mxu0 0.0
    %595 = vmatpush1.xpose.msra.mxu0 0.0
    %596 = vmatprep.subr.mxu0 0.0
    %597 = vmatpush1.xpose.msra.mxu0 0.0
    %598 = vmatprep.subr.mxu0 0.0
    %599 = vmatpush1.xpose.msra.mxu0 0.0
    %600 = vmatprep.subr.mxu0 0.0
    %601 = vmatpush1.xpose.msra.mxu0 0.0
    %602 = vmatprep.subr.mxu0 0.0
    %603 = vmatpush1.xpose.msra.mxu0 0.0
    %604 = vmatprep.subr.mxu0 0.0
    %605 = vmatpush1.xpose.msra.mxu0 0.0
    %606 = vmatprep.subr.mxu0 0.0
    %607 = vmatpush1.xpose.msra.mxu0 0.0
    %608 = vmatprep.mubr.f32.mxu0 0.0
    %609 = vmatmul.mubr.f32.gmra.mrb[0].mxu0 %v494
    %v610 = vpop.f32.mrb[0].mxu0
    %v611 = vadd.f32 %v492, %v610
    %v612 = vpop.f32.mrb[0].mxu0
    %613 = vdwg.mxu0
    %614 = vst [vmem:[#allocation3] sm:$0x1] %v611
    // Predicated region
    $region26: #{tpu_custom_call.1} parent=1 // pred_check
      _
    $region27: #{tpu_custom_call.1} parent=1 // pred_check_branch
      %616 = sbr.rel (0) target = $region29
    $region28: #{tpu_custom_call.1} parent=1 // pred_region
      %s618 = ssub.s32 16, 16
      %619 = vsyncadd [#allocation4], %s618
      %s621 = sshll.u32 [#allocation3], 4
      %s622 = int_to_ptr.vmem [resolvable:$true] %s621
      %624 = dma.vmem_to_hbm [thread:$0]  %s622, 16, %s6, [#allocation4]
    $region29: #{tpu_custom_call.1} parent=1 // pred_fallthru
      _
    // Predicated region
    $region30: #{tpu_custom_call.1} parent=1 // pred_check
      _
    $region31: #{tpu_custom_call.1} parent=1 // pred_check_branch
      %626 = sbr.rel (0) target = $region33
    $region32: #{tpu_custom_call.1} parent=1 // pred_region
      %627 = dma.done [#allocation4], 16
    $region33: #{tpu_custom_call.1} parent=1 // pred_fallthru
      _
    %628 = vsyncpa [#allocation4], 1

</llo_original>
